<compile_context>
chip_gen: v7x
topology: tpu7x:2x2x1
jax: 0.10.0
libtpu: 0.0.40
codegen_flags: <defaults>
</compile_context>

<pallas_src>
import functools

import jax
import jax.numpy as jnp
from jax.experimental import pallas as pl
from jax.experimental.pallas import tpu as pltpu


def plm_kernel(x_ref, wbb_ref, bbb_ref, wcls_ref, bcls_ref,
               feat_ref, logit_ref, acc_ref, *, true_l, padded_l):
    """Fused PLM forward step for one (batch-tile, seq-tile) grid point.

    x_ref:     [tile_B, tile_L, D]  input tokens (VMEM, double-buffered by Pallas)
    wbb_ref:   [D, H]               backbone projection weight (block-invariant)
    bbb_ref:   [1, H]               backbone projection bias
    wcls_ref:  [H, Kp]              classifier weight (lane-dense padded)
    bcls_ref:  [1, Kp]              classifier bias (padded)
    feat_ref:  [tile_B, H]          output 'bb_feat' (resident across the L axis)
    logit_ref: [tile_B, Kp]         output 'logit' (padded; sliced in the wrapper)
    acc_ref:   [tile_B, H] f32      VMEM scratch accumulator for the sequence sum
    """
    l = pl.program_id(1)
    tb, tl, d = x_ref.shape
    h_dim = wbb_ref.shape[1]

    @pl.when(l == 0)
    def _init():
        acc_ref[...] = jnp.zeros_like(acc_ref)

    # Backbone projection: one dense (tile_B*tile_L, D) @ (D, H) MXU matmul,
    # native operand dtype, f32 accumulation.
    x2d = x_ref[...].reshape(tb * tl, d)
    h = jnp.dot(x2d, wbb_ref[...], preferred_element_type=jnp.float32)
    h = h + bbb_ref[...].astype(jnp.float32)          # (1, H) broadcast, once/step
    h = jax.nn.gelu(h, approximate=True)              # f32 on the VPU/EUP

    # Sequence-sum accumulation (mask padded tail rows only if padding exists).
    h3 = h.reshape(tb, tl, h_dim)
    if padded_l > true_l:                             # static (trace-time) branch
        local = jax.lax.broadcasted_iota(jnp.int32, (1, tl, 1), 1)
        valid = (l * tl + local) < true_l
        h3 = jnp.where(valid, h3, 0.0)
    acc_ref[...] += jnp.sum(h3, axis=1)

    @pl.when(l == pl.num_programs(1) - 1)
    def _finalize():
        feat = acc_ref[...] * (1.0 / true_l)          # mean over the TRUE sequence length
        feat_ref[...] = feat.astype(feat_ref.dtype)
        # Classifier: nn.Linear(hdim, K) -> feat @ W^T + b (lane-dense padded K).
        logit = jnp.dot(feat.astype(wcls_ref.dtype), wcls_ref[...],
                        preferred_element_type=jnp.float32)
        logit = logit + bcls_ref[...].astype(jnp.float32)
        logit_ref[...] = logit.astype(logit_ref.dtype)


def plm_forward(x, w_bb, b_bb, w_cls, b_cls, *, tile_l=None, tile_b=None):
    """Wrapper mirroring PLM.forward: returns {'bb_feat': ..., 'logit': ...}."""
    B, L, D = x.shape
    H = w_bb.shape[1]
    K = w_cls.shape[1]

    # ---- tile selection (safe defaults for v5e / v6e / v7x VMEM budgets) ----
    if tile_l is None:
        tile_l = min(256, pl.cdiv(L, 8) * 8)           # multiple of 8, capped at 256
    l_pad = pl.cdiv(L, tile_l) * tile_l
    if tile_b is None:
        if B % 8 == 0:
            tile_b = next(c for c in (128, 64, 32, 16, 8) if B % c == 0)
        else:
            tile_b = B                                  # full-batch block (small B)

    # ---- lane-dense classifier head: pad K up to a multiple of 128 ----
    k_pad = max(128, pl.cdiv(K, 128) * 128)
    w_cls_p = jnp.pad(w_cls, ((0, 0), (0, k_pad - K)))
    b_cls_p = jnp.pad(b_cls, ((0, k_pad - K),)).reshape(1, k_pad)
    b_bb_2d = b_bb.reshape(1, H)

    # ---- pad the sequence up to a multiple of tile_l (masked inside the kernel) ----
    if l_pad != L:
        x = jnp.pad(x, ((0, 0), (0, l_pad - L), (0, 0)))

    grid = (B // tile_b, l_pad // tile_l)

    kernel = functools.partial(plm_kernel, true_l=L, padded_l=l_pad)

    itemsize = x.dtype.itemsize
    cost = pl.CostEstimate(
        flops=2 * B * l_pad * D * H + 2 * B * H * k_pad,
        transcendentals=B * l_pad * H,
        bytes_accessed=(B * l_pad * D * itemsize
                        + D * H * w_bb.dtype.itemsize
                        + H * k_pad * w_cls_p.dtype.itemsize
                        + B * H * 4 + B * k_pad * 4),
    )

    feat, logit_p = pl.pallas_call(
        kernel,
        out_shape=(
            jax.ShapeDtypeStruct((B, H), jnp.float32),
            jax.ShapeDtypeStruct((B, k_pad), jnp.float32),
        ),
        grid_spec=pltpu.PrefetchScalarGridSpec(
            num_scalar_prefetch=0,
            grid=grid,
            in_specs=[
                pl.BlockSpec((tile_b, tile_l, D), lambda b, l: (b, l, 0)),
                pl.BlockSpec((D, H), lambda b, l: (0, 0)),
                pl.BlockSpec((1, H), lambda b, l: (0, 0)),
                pl.BlockSpec((H, k_pad), lambda b, l: (0, 0)),
                pl.BlockSpec((1, k_pad), lambda b, l: (0, 0)),
            ],
            out_specs=(
                pl.BlockSpec((tile_b, H), lambda b, l: (b, 0)),
                pl.BlockSpec((tile_b, k_pad), lambda b, l: (b, 0)),
            ),
            scratch_shapes=[pltpu.VMEM((tile_b, H), jnp.float32)],
        ),
        compiler_params=pltpu.CompilerParams(
            dimension_semantics=("parallel", "arbitrary")),
        cost_estimate=cost,
    )(x, w_bb, b_bb_2d, w_cls_p, b_cls_p)

    return {'bb_feat': feat, 'logit': logit_p[:, :K]}


if __name__ == "__main__":
    # Small shapes consistent with the module's forward:
    #   batch B=2, sequence L=20 (padded to 24 -> exercises the masked tail),
    #   input feature D=32, backbone hdim H=32, K=1 (data_path without 'secondary').
    B, L, D, H, K = 2, 20, 32, 32, 1

    key = jax.random.PRNGKey(0)
    kx, kwb, kbb, kwc, kbc = jax.random.split(key, 5)

    x = jax.random.normal(kx, (B, L, D), dtype=jnp.float32)
    # Deterministic parameter init (synthetic; no checkpoint load).
    w_bb = jax.random.normal(kwb, (D, H), dtype=jnp.float32) * (1.0 / jnp.sqrt(D))
    b_bb = jax.random.normal(kbb, (H,), dtype=jnp.float32) * 0.01
    w_cls = jax.random.normal(kwc, (H, K), dtype=jnp.float32) * (1.0 / jnp.sqrt(H))
    b_cls = jax.random.normal(kbc, (K,), dtype=jnp.float32) * 0.01

    # tile_l=8 so the demo actually runs a multi-step L reduction (grid = (1, 3)).
    fwd = jax.jit(functools.partial(plm_forward, tile_l=8))
    pred = fwd(x, w_bb, b_bb, w_cls, b_cls)
    jax.block_until_ready(pred)

    # Sanity: compare against plain-JAX reference of the same math.
    h_ref = jax.nn.gelu(jnp.einsum('bld,dh->blh', x, w_bb) + b_bb, approximate=True)
    feat_ref = jnp.mean(h_ref, axis=1)
    logit_ref = feat_ref @ w_cls + b_cls
    assert pred['bb_feat'].shape == (B, H)
    assert pred['logit'].shape == (B, K)
    assert jnp.allclose(pred['bb_feat'], feat_ref, atol=1e-4, rtol=1e-4)
    assert jnp.allclose(pred['logit'], logit_ref, atol=1e-4, rtol=1e-4)

    print("KERNEL_OK")
</pallas_src>

<mosaic_0001>
module attributes {stable_mosaic.version = 11 : i64} {
  func.func @plm_kernel(%arg0: i32, %arg1: i32, %arg2: memref<2x8x32xf32, #tpu.memory_space<vmem>>, %arg3: memref<32x32xf32, #tpu.memory_space<vmem>>, %arg4: memref<1x32xf32, #tpu.memory_space<vmem>>, %arg5: memref<32x128xf32, #tpu.memory_space<vmem>>, %arg6: memref<1x128xf32, #tpu.memory_space<vmem>>, %arg7: memref<2x32xf32, #tpu.memory_space<vmem>>, %arg8: memref<2x128xf32, #tpu.memory_space<vmem>>, %arg9: memref<2x32xf32, #tpu.memory_space<vmem>>) attributes {dimension_semantics = [#tpu.dimension_semantics<parallel>, #tpu.dimension_semantics<arbitrary>], iteration_bounds = array<i64: 1, 3>, scalar_prefetch = 0 : i64, scratch_operands = 1 : i64, tpu.core_type = #tpu.core_type<tc>, window_params = [{transform_indices = @transform_0, window_bounds = array<i64: 2, 8, 32>}, {pipeline_mode = #tpu.pipeline_mode<synchronous>, transform_indices = @transform_1, window_bounds = array<i64: 32, 32>}, {pipeline_mode = #tpu.pipeline_mode<synchronous>, transform_indices = @transform_2, window_bounds = array<i64: 1, 32>}, {pipeline_mode = #tpu.pipeline_mode<synchronous>, transform_indices = @transform_3, window_bounds = array<i64: 32, 128>}, {pipeline_mode = #tpu.pipeline_mode<synchronous>, transform_indices = @transform_4, window_bounds = array<i64: 1, 128>}, {transform_indices = @transform_5, window_bounds = array<i64: 2, 32>}, {transform_indices = @transform_6, window_bounds = array<i64: 2, 128>}]} {
    %c0_i32 = arith.constant 0 : i32
    %0 = arith.cmpi eq, %arg1, %c0_i32 : i32
    %1 = arith.extui %0 : i1 to i32
    %c0_i32_0 = arith.constant 0 : i32
    %2 = arith.cmpi ne, %1, %c0_i32_0 : i32
    scf.if %2 {
      %cst_18 = arith.constant 0.000000e+00 : f32
      %41 = vector.broadcast %cst_18 : f32 to vector<2x32xf32>
      %c0_19 = arith.constant 0 : index
      %c0_20 = arith.constant 0 : index
      %42 = vector.load %arg9[%c0_19, %c0_20] : memref<2x32xf32, #tpu.memory_space<vmem>>, vector<2x32xf32>
      tpu.vector_store %arg9[%c0_19, %c0_20], %41 {strides = array<i32>} : memref<2x32xf32, #tpu.memory_space<vmem>>, vector<2x32xf32>,
    } else {
    }
    %c0 = arith.constant 0 : index
    %c0_1 = arith.constant 0 : index
    %c0_2 = arith.constant 0 : index
    %3 = vector.load %arg2[%c0, %c0_1, %c0_2] : memref<2x8x32xf32, #tpu.memory_space<vmem>>, vector<2x8x32xf32>
    %4 = vector.shape_cast %3 : vector<2x8x32xf32> to vector<16x32xf32>
    %c0_3 = arith.constant 0 : index
    %c0_4 = arith.constant 0 : index
    %5 = vector.load %arg3[%c0_3, %c0_4] : memref<32x32xf32, #tpu.memory_space<vmem>>, vector<32x32xf32>
    %cst = arith.constant dense<0.000000e+00> : vector<16x32xf32>
    %6 = tpu.matmul %4, %5, %cst {dimension_numbers = #tpu.dot_dimension_numbers<[1], [0], [0], [1], [0, 0, 1, 1], [], []>} : vector<16x32xf32>, vector<32x32xf32>, vector<16x32xf32> -> vector<16x32xf32>
    %c0_5 = arith.constant 0 : index
    %c0_6 = arith.constant 0 : index
    %7 = vector.load %arg4[%c0_5, %c0_6] : memref<1x32xf32, #tpu.memory_space<vmem>>, vector<1x32xf32>
    %8 = vector.broadcast %7 : vector<1x32xf32> to vector<16x32xf32>
    %9 = arith.addf %6, %8 : vector<16x32xf32>
    %10 = arith.mulf %9, %9 : vector<16x32xf32>
    %11 = arith.mulf %9, %10 : vector<16x32xf32>
    %cst_7 = arith.constant 4.471500e-02 : f32
    %12 = vector.broadcast %cst_7 : f32 to vector<16x32xf32>
    %13 = arith.mulf %12, %11 : vector<16x32xf32>
    %14 = arith.addf %9, %13 : vector<16x32xf32>
    %cst_8 = arith.constant 0.797884583 : f32
    %15 = vector.broadcast %cst_8 : f32 to vector<16x32xf32>
    %16 = arith.mulf %15, %14 : vector<16x32xf32>
    %17 = math.tanh %16 : vector<16x32xf32>
    %cst_9 = arith.constant 1.000000e+00 : f32
    %18 = vector.broadcast %cst_9 : f32 to vector<16x32xf32>
    %19 = arith.addf %18, %17 : vector<16x32xf32>
    %cst_10 = arith.constant 5.000000e-01 : f32
    %20 = vector.broadcast %cst_10 : f32 to vector<16x32xf32>
    %21 = arith.mulf %20, %19 : vector<16x32xf32>
    %22 = arith.mulf %9, %21 : vector<16x32xf32>
    %23 = vector.shape_cast %22 : vector<16x32xf32> to vector<2x8x32xf32>
    %24 = tpu.iota {dimensions = array<i32: 1>} : vector<1x8x1xi32>
    %c8_i32 = arith.constant 8 : i32
    %25 = arith.muli %arg1, %c8_i32 : i32
    %26 = vector.broadcast %25 : i32 to vector<1x8x1xi32>
    %27 = arith.addi %26, %24 : vector<1x8x1xi32>
    %c20_i32 = arith.constant 20 : i32
    %28 = vector.broadcast %c20_i32 : i32 to vector<1x8x1xi32>
    %29 = arith.cmpi slt, %27, %28 : vector<1x8x1xi32>
    %cst_11 = arith.constant 0.000000e+00 : f32
    %30 = vector.shape_cast %29 : vector<1x8x1xi1> to vector<1x8x1xi1>
    %31 = vector.broadcast %30 : vector<1x8x1xi1> to vector<2x8x32xi1>
    %32 = vector.broadcast %cst_11 : f32 to vector<2x8x32xf32>
    %33 = arith.select %31, %23, %32 : vector<2x8x32xi1>, vector<2x8x32xf32>
    %c0_12 = arith.constant 0 : index
    %c0_13 = arith.constant 0 : index
    %34 = vector.load %arg9[%c0_12, %c0_13] : memref<2x32xf32, #tpu.memory_space<vmem>>, vector<2x32xf32>
    %cst_14 = arith.constant dense<0.000000e+00> : vector<2x32xf32>
    %35 = vector.multi_reduction <add>, %33, %cst_14 [1] : vector<2x8x32xf32> to vector<2x32xf32>
    %36 = arith.addf %34, %35 : vector<2x32xf32>
    %c0_15 = arith.constant 0 : index
    %c0_16 = arith.constant 0 : index
    %37 = vector.load %arg9[%c0_15, %c0_16] : memref<2x32xf32, #tpu.memory_space<vmem>>, vector<2x32xf32>
    tpu.vector_store %arg9[%c0_15, %c0_16], %36 {strides = array<i32>} : memref<2x32xf32, #tpu.memory_space<vmem>>, vector<2x32xf32>,
    %c2_i32 = arith.constant 2 : i32
    %38 = arith.cmpi eq, %arg1, %c2_i32 : i32
    %39 = arith.extui %38 : i1 to i32
    %c0_i32_17 = arith.constant 0 : i32
    %40 = arith.cmpi ne, %39, %c0_i32_17 : i32
    scf.if %40 {
      %c0_18 = arith.constant 0 : index
      %c0_19 = arith.constant 0 : index
      %41 = vector.load %arg9[%c0_18, %c0_19] : memref<2x32xf32, #tpu.memory_space<vmem>>, vector<2x32xf32>
      %cst_20 = arith.constant 5.000000e-02 : f32
      %42 = vector.broadcast %cst_20 : f32 to vector<2x32xf32>
      %43 = arith.mulf %41, %42 : vector<2x32xf32>
      %c0_21 = arith.constant 0 : index
      %c0_22 = arith.constant 0 : index
      %44 = vector.load %arg7[%c0_21, %c0_22] : memref<2x32xf32, #tpu.memory_space<vmem>>, vector<2x32xf32>
      tpu.vector_store %arg7[%c0_21, %c0_22], %43 {strides = array<i32>} : memref<2x32xf32, #tpu.memory_space<vmem>>, vector<2x32xf32>,
      %c0_23 = arith.constant 0 : index
      %c0_24 = arith.constant 0 : index
      %45 = vector.load %arg5[%c0_23, %c0_24] : memref<32x128xf32, #tpu.memory_space<vmem>>, vector<32x128xf32>
      %cst_25 = arith.constant dense<0.000000e+00> : vector<2x128xf32>
      %46 = tpu.matmul %43, %45, %cst_25 {dimension_numbers = #tpu.dot_dimension_numbers<[1], [0], [0], [1], [0, 0, 1, 1], [], []>} : vector<2x32xf32>, vector<32x128xf32>, vector<2x128xf32> -> vector<2x128xf32>
      %c0_26 = arith.constant 0 : index
      %c0_27 = arith.constant 0 : index
      %47 = vector.load %arg6[%c0_26, %c0_27] : memref<1x128xf32, #tpu.memory_space<vmem>>, vector<1x128xf32>
      %48 = vector.broadcast %47 : vector<1x128xf32> to vector<2x128xf32>
      %49 = arith.addf %46, %48 : vector<2x128xf32>
      %c0_28 = arith.constant 0 : index
      %c0_29 = arith.constant 0 : index
      %50 = vector.load %arg8[%c0_28, %c0_29] : memref<2x128xf32, #tpu.memory_space<vmem>>, vector<2x128xf32>
      tpu.vector_store %arg8[%c0_28, %c0_29], %49 {strides = array<i32>} : memref<2x128xf32, #tpu.memory_space<vmem>>, vector<2x128xf32>,
    } else {
    }
    return
  }
  func.func @transform_0(%arg0: i32, %arg1: i32) -> (i32, i32, i32) {
    %c0_i32 = arith.constant 0 : i32
    %c0_i32_0 = arith.constant 0 : i32
    return %arg0, %arg1, %c0_i32 : i32, i32, i32
  }
  func.func @transform_1(%arg0: i32, %arg1: i32) -> (i32, i32) {
    %c0_i32 = arith.constant 0 : i32
    %c0_i32_0 = arith.constant 0 : i32
    %c0_i32_1 = arith.constant 0 : i32
    return %c0_i32, %c0_i32_0 : i32, i32
  }
  func.func @transform_2(%arg0: i32, %arg1: i32) -> (i32, i32) {
    %c0_i32 = arith.constant 0 : i32
    %c0_i32_0 = arith.constant 0 : i32
    %c0_i32_1 = arith.constant 0 : i32
    return %c0_i32, %c0_i32_0 : i32, i32
  }
  func.func @transform_3(%arg0: i32, %arg1: i32) -> (i32, i32) {
    %c0_i32 = arith.constant 0 : i32
    %c0_i32_0 = arith.constant 0 : i32
    %c0_i32_1 = arith.constant 0 : i32
    return %c0_i32, %c0_i32_0 : i32, i32
  }
  func.func @transform_4(%arg0: i32, %arg1: i32) -> (i32, i32) {
    %c0_i32 = arith.constant 0 : i32
    %c0_i32_0 = arith.constant 0 : i32
    %c0_i32_1 = arith.constant 0 : i32
    return %c0_i32, %c0_i32_0 : i32, i32
  }
  func.func @transform_5(%arg0: i32, %arg1: i32) -> (i32, i32) {
    %c0_i32 = arith.constant 0 : i32
    %c0_i32_0 = arith.constant 0 : i32
    return %arg0, %c0_i32 : i32, i32
  }
  func.func @transform_6(%arg0: i32, %arg1: i32) -> (i32, i32) {
    %c0_i32 = arith.constant 0 : i32
    %c0_i32_0 = arith.constant 0 : i32
    return %arg0, %c0_i32 : i32, i32
  }
}

</mosaic_0001>

<llo_original>
// kernel: plm_forward.1
$region0: #{plm_forward.1}
  #allocation0 [shape = 'u32[]', space=smem, size = 0x4, offset = 0x4, fixed_abs, tag = 'smem constant byte address 0x4 - core index']
  #allocation1 [shape = 'u32[144,128]{1,0:T(1,128)}', space=vmem, size = 0x12000, scoped, tag = 'internal scratch']
  #allocation2 [shape = 'f32[2,32]{1,0:T(2,128)}', space=vmem, size = 0x400, scoped, tag = 'scratch operand']
  %s0 = inlined_call_operand.vmem [shape: f32[2,24,32], index: 0, kind: input, shape index: {}]
  %s1 = inlined_call_operand.vmem [shape: f32[32,32], index: 1, kind: input, shape index: {}]
  %s2 = inlined_call_operand.vmem [shape: f32[1,32], index: 2, kind: input, shape index: {}]
  %s3 = inlined_call_operand.vmem [shape: f32[32,128], index: 3, kind: input, shape index: {}]
  %s4 = inlined_call_operand.vmem [shape: f32[1,128], index: 4, kind: input, shape index: {}]
  %s5 = inlined_call_operand.hbm [shape: f32[2,32], index: 5, kind: output, shape index: {0}]
  %s6 = inlined_call_operand.vmem [shape: f32[2,128], index: 6, kind: output, shape index: {1}]
  %7 = xla_tuple %s5, %s6
  %s8 = sld [smem:[#allocation0]]
  $region107: #{plm_forward.1} parent=0
    _
  %s10 = ssub.s32 1, %s8
  %s11 = scalar_select 0, %s10, %s8
  $region1: #{plm_forward.1} parent=0
    #allocation3 [shape = 'u8[16384]{0}', space=vmem, size = 0x4000, scoped, tag = 'input window, operand 0']
    #allocation4 [shape = 'u8[1024]{0}', space=vmem, size = 0x400, scoped, tag = 'output window, operand 0, single buffered']
    #allocation5 [shape = 's32[2]{0}', space=sflag, size = 0x8, scoped, tag = 'scoped memory for plm_forward.1']
    %12 = vsyncpa [#allocation5], 0
    loop: start=0, step=1, limit=5
    $region2: #{plm_forward.1} parent=1 // loop_pre_header
      _
    $region3: #{plm_forward.1} parent=1 // loop_header
      %s14 = sphi 0, %s18
      %p15 = scmp.ge.s32.totalorder %s14, 5
      %s21 = sphi 0, %s33
      %s22 = sphi 0, %s29
      %s23 = sphi 0, %s21
      %s24 = sphi 0, %s22
      %s25 = sphi 0, %s23
      %s26 = sphi 0, %s24
      %s38 = sphi 0, %s40
      %s41 = sphi 0, %s38
      %s42 = sphi 0, %s41
      %s58 = sphi 0, %s42
      %s62 = sphi 0, %s62
      %s64 = sphi 0, %s62
      %s65 = sphi 0, %s64
      %s79 = sphi 0, %s65
      %s83 = sphi 0, %s83
      %s85 = sphi 0, %s83
      %s86 = sphi 0, %s85
      %s100 = sphi 0, %s86
      %s104 = sphi 0, %s104
      %s106 = sphi 0, %s104
      %s107 = sphi 0, %s106
      %s121 = sphi 0, %s107
      %s125 = sphi 0, %s125
      %s127 = sphi 0, %s125
      %s128 = sphi 0, %s127
      %s142 = sphi 0, %s128
      %s148 = sphi 0, %s150
      %s151 = sphi 0, %s148
      %s152 = sphi 0, %s151
      %s168 = sphi 0, %s152
      %s174 = sphi 0, %s176
      %s177 = sphi 0, %s174
      %s178 = sphi 0, %s177
      %s194 = sphi 0, %s178
    $region4: #{plm_forward.1} parent=1 // loop_header_branch
      %17 = sbr.rel (%p15) target = $region8
    $region5: #{plm_forward.1} parent=1 // loop_body
      %s19 = ssub.s32 %s14, 1
      %s20 = ssub.s32 %s14, 2
      %s27 = sadd.s32 1, %s22
      %p28 = scmp.ge.s32.totalorder %s27, 3
      %s29 = scalar_select %p28, 0, %s27
      %s30 = sadd.s32 1, %s21
      %s31 = scalar_select %p28, %s30, %s21
      %p32 = scmp.ge.s32.totalorder %s31, 1
      %s33 = scalar_select %p32, 0, %s31
      %s34 = ssub.s32 %s21, %s33
      %s35 = ssub.s32 %s22, %s29
      %s36 = sor.u32 %s34, %s35
      %p37 = scmp.eq.s32.totalorder %s36, 0
      %s39 = sadd.s32 %s38, 1
      %s40 = scalar_select %p37, %s38, %s39
      %p43 = pneg %p37
      %p44 = scmp.eq.s32.totalorder %s14, 2
      %p45 = por %p43, %p44
      %p46 = scmp.ne.s32.totalorder %s38, %s41
      %p47 = scmp.eq.s32.totalorder %s14, 0
      %p48 = por %p46, %p47
      %p49 = scmp.ne.s32.totalorder %s38, %s41
      %p50 = scmp.eq.s32.totalorder %s19, 2
      %p51 = por %p49, %p50
      %p52 = scmp.ne.s32.totalorder %s41, %s42
      %p53 = scmp.eq.s32.totalorder %s19, 0
      %p54 = por %p52, %p53
      %p55 = scmp.ne.s32.totalorder %s41, %s42
      %p56 = scmp.eq.s32.totalorder %s20, 2
      %p57 = por %p55, %p56
      %p59 = scmp.ne.s32.totalorder %s42, %s58
      %p60 = scmp.eq.s32.totalorder %s20, 0
      %p61 = por %p59, %p60
      %s63 = sadd.s32 %s62, 1
      %p66 = scmp.eq.s32.totalorder %s14, 2
      %p67 = scmp.ne.s32.totalorder %s62, %s64
      %p68 = scmp.eq.s32.totalorder %s14, 0
      %p69 = por %p67, %p68
      %p70 = scmp.ne.s32.totalorder %s62, %s64
      %p71 = scmp.eq.s32.totalorder %s19, 2
      %p72 = por %p70, %p71
      %p73 = scmp.ne.s32.totalorder %s64, %s65
      %p74 = scmp.eq.s32.totalorder %s19, 0
      %p75 = por %p73, %p74
      %p76 = scmp.ne.s32.totalorder %s64, %s65
      %p77 = scmp.eq.s32.totalorder %s20, 2
      %p78 = por %p76, %p77
      %p80 = scmp.ne.s32.totalorder %s65, %s79
      %p81 = scmp.eq.s32.totalorder %s20, 0
      %p82 = por %p80, %p81
      %s84 = sadd.s32 %s83, 1
      %p87 = scmp.eq.s32.totalorder %s14, 2
      %p88 = scmp.ne.s32.totalorder %s83, %s85
      %p89 = scmp.eq.s32.totalorder %s14, 0
      %p90 = por %p88, %p89
      %p91 = scmp.ne.s32.totalorder %s83, %s85
      %p92 = scmp.eq.s32.totalorder %s19, 2
      %p93 = por %p91, %p92
      %p94 = scmp.ne.s32.totalorder %s85, %s86
      %p95 = scmp.eq.s32.totalorder %s19, 0
      %p96 = por %p94, %p95
      %p97 = scmp.ne.s32.totalorder %s85, %s86
      %p98 = scmp.eq.s32.totalorder %s20, 2
      %p99 = por %p97, %p98
      %p101 = scmp.ne.s32.totalorder %s86, %s100
      %p102 = scmp.eq.s32.totalorder %s20, 0
      %p103 = por %p101, %p102
      %s105 = sadd.s32 %s104, 1
      %p108 = scmp.eq.s32.totalorder %s14, 2
      %p109 = scmp.ne.s32.totalorder %s104, %s106
      %p110 = scmp.eq.s32.totalorder %s14, 0
      %p111 = por %p109, %p110
      %p112 = scmp.ne.s32.totalorder %s104, %s106
      %p113 = scmp.eq.s32.totalorder %s19, 2
      %p114 = por %p112, %p113
      %p115 = scmp.ne.s32.totalorder %s106, %s107
      %p116 = scmp.eq.s32.totalorder %s19, 0
      %p117 = por %p115, %p116
      %p118 = scmp.ne.s32.totalorder %s106, %s107
      %p119 = scmp.eq.s32.totalorder %s20, 2
      %p120 = por %p118, %p119
      %p122 = scmp.ne.s32.totalorder %s107, %s121
      %p123 = scmp.eq.s32.totalorder %s20, 0
      %p124 = por %p122, %p123
      %s126 = sadd.s32 %s125, 1
      %p129 = scmp.eq.s32.totalorder %s14, 2
      %p130 = scmp.ne.s32.totalorder %s125, %s127
      %p131 = scmp.eq.s32.totalorder %s14, 0
      %p132 = por %p130, %p131
      %p133 = scmp.ne.s32.totalorder %s125, %s127
      %p134 = scmp.eq.s32.totalorder %s19, 2
      %p135 = por %p133, %p134
      %p136 = scmp.ne.s32.totalorder %s127, %s128
      %p137 = scmp.eq.s32.totalorder %s19, 0
      %p138 = por %p136, %p137
      %p139 = scmp.ne.s32.totalorder %s127, %s128
      %p140 = scmp.eq.s32.totalorder %s20, 2
      %p141 = por %p139, %p140
      %p143 = scmp.ne.s32.totalorder %s128, %s142
      %p144 = scmp.eq.s32.totalorder %s20, 0
      %p145 = por %p143, %p144
      %s146 = ssub.s32 %s21, %s33
      %p147 = scmp.eq.s32.totalorder %s146, 0
      %s149 = sadd.s32 %s148, 1
      %s150 = scalar_select %p147, %s148, %s149
      %p153 = pneg %p147
      %p154 = scmp.eq.s32.totalorder %s14, 2
      %p155 = por %p153, %p154
      %p156 = scmp.ne.s32.totalorder %s148, %s151
      %p157 = scmp.eq.s32.totalorder %s14, 0
      %p158 = por %p156, %p157
      %p159 = scmp.ne.s32.totalorder %s148, %s151
      %p160 = scmp.eq.s32.totalorder %s19, 2
      %p161 = por %p159, %p160
      %p162 = scmp.ne.s32.totalorder %s151, %s152
      %p163 = scmp.eq.s32.totalorder %s19, 0
      %p164 = por %p162, %p163
      %p165 = scmp.ne.s32.totalorder %s151, %s152
      %p166 = scmp.eq.s32.totalorder %s20, 2
      %p167 = por %p165, %p166
      %p169 = scmp.ne.s32.totalorder %s152, %s168
      %p170 = scmp.eq.s32.totalorder %s20, 0
      %p171 = por %p169, %p170
      %s172 = ssub.s32 %s21, %s33
      %p173 = scmp.eq.s32.totalorder %s172, 0
      %s175 = sadd.s32 %s174, 1
      %s176 = scalar_select %p173, %s174, %s175
      %p179 = pneg %p173
      %p180 = scmp.eq.s32.totalorder %s14, 2
      %p181 = por %p179, %p180
      %p182 = scmp.ne.s32.totalorder %s174, %s177
      %p183 = scmp.eq.s32.totalorder %s14, 0
      %p184 = por %p182, %p183
      %p185 = scmp.ne.s32.totalorder %s174, %s177
      %p186 = scmp.eq.s32.totalorder %s19, 2
      %p187 = por %p185, %p186
      %p188 = scmp.ne.s32.totalorder %s177, %s178
      %p189 = scmp.eq.s32.totalorder %s19, 0
      %p190 = por %p188, %p189
      %p191 = scmp.ne.s32.totalorder %s177, %s178
      %p192 = scmp.eq.s32.totalorder %s20, 2
      %p193 = por %p191, %p192
      %p195 = scmp.ne.s32.totalorder %s178, %s194
      %p196 = scmp.eq.s32.totalorder %s20, 0
      %p197 = por %p195, %p196
      %p198 = scmp.le.s32.totalorder 1, %s14
      %p199 = scmp.lt.s32.totalorder %s14, 4
      %p200 = pnand %p198, %p199
      %p201 = pneg %p200
      // Predicated region
      $region9: #{plm_forward.1} parent=5 // pred_check
        _
      $region10: #{plm_forward.1} parent=5 // pred_check_branch
        %203 = sbr.rel (%p200) target = $region12
      $region11: #{plm_forward.1} parent=5 // pred_region
        %s204 = ssub.s32 %s14, 1
        // Predicated region
        $region13: #{plm_forward.1} parent=11 // pred_check
          %p205 = pneg %p75
        $region14: #{plm_forward.1} parent=11 // pred_check_branch
          %207 = sbr.rel (%p205) target = $region16
        $region15: #{plm_forward.1} parent=11 // pred_region
          _
        $region16: #{plm_forward.1} parent=11 // pred_fallthru
          _
        // Predicated region
        $region17: #{plm_forward.1} parent=11 // pred_check
          %p208 = pneg %p96
        $region18: #{plm_forward.1} parent=11 // pred_check_branch
          %210 = sbr.rel (%p208) target = $region20
        $region19: #{plm_forward.1} parent=11 // pred_region
          _
        $region20: #{plm_forward.1} parent=11 // pred_fallthru
          _
        // Predicated region
        $region21: #{plm_forward.1} parent=11 // pred_check
          %p211 = pneg %p117
        $region22: #{plm_forward.1} parent=11 // pred_check_branch
          %213 = sbr.rel (%p211) target = $region24
        $region23: #{plm_forward.1} parent=11 // pred_region
          _
        $region24: #{plm_forward.1} parent=11 // pred_fallthru
          _
        // Predicated region
        $region25: #{plm_forward.1} parent=11 // pred_check
          %p214 = pneg %p138
        $region26: #{plm_forward.1} parent=11 // pred_check_branch
          %216 = sbr.rel (%p214) target = $region28
        $region27: #{plm_forward.1} parent=11 // pred_region
          _
        $region28: #{plm_forward.1} parent=11 // pred_fallthru
          _
      $region12: #{plm_forward.1} parent=5 // pred_fallthru
        _
      %p217 = scmp.lt.s32.totalorder %s14, 3
      // Predicated region
      $region29: #{plm_forward.1} parent=5 // pred_check
        %p218 = pneg %p217
      $region30: #{plm_forward.1} parent=5 // pred_check_branch
        %220 = sbr.rel (%p218) target = $region32
      $region31: #{plm_forward.1} parent=5 // pred_region
        // Predicated region
        $region33: #{plm_forward.1} parent=31 // pred_check
          %p221 = pneg %p48
        $region34: #{plm_forward.1} parent=31 // pred_check_branch
          %223 = sbr.rel (%p221) target = $region36
        $region35: #{plm_forward.1} parent=31 // pred_region
          %s224 = sand.u32 %s38, 1
          %s225 = sand.u32 %s38, 1
          %s226 = smul.addr %s225, 16
          %s227 = scalar_lea.vmem [#allocation3], %s226
          %s228 = smul.u32 2, %s21
          %s229 = smul.addr %s228, 3
          %s230 = sadd.s32 %s22, %s229
          %s231 = smul.addr %s230, 8
          %s232 = scalar_lea.vmem %s0, %s231
          // Predicated region
          $region37: #{plm_forward.1} parent=35 // pred_check
            _
          $region38: #{plm_forward.1} parent=35 // pred_check_branch
            %234 = sbr.rel (0) target = $region40
          $region39: #{plm_forward.1} parent=35 // pred_region
            // Predicated region
            $region41: #{plm_forward.1} parent=39 // pred_check
              _
            $region42: #{plm_forward.1} parent=39 // pred_check_branch
              %236 = sbr.rel (0) target = $region44
            $region43: #{plm_forward.1} parent=39 // pred_region
              // Predicated region
              $region56: #{plm_forward.1} parent=43 // pred_check
                _
              $region57: #{plm_forward.1} parent=43 // pred_check_branch
                %253 = sbr.rel (0) target = $region59
              $region58: #{plm_forward.1} parent=43 // pred_region
                loop: start=0, step=1, limit=1
                $region60: #{plm_forward.1} parent=58 // loop_pre_header
                  _
                $region61: #{plm_forward.1} parent=58 // loop_header
                  %s255 = sphi 0, %s259
                  %p256 = scmp.ge.s32.totalorder %s255, 1
                  %s260 = sphi %s232, %s232
                  %s261 = sphi %s227, %s227
                $region62: #{plm_forward.1} parent=58 // loop_header_branch
                  %258 = sbr.rel (%p256) target = $region66
                $region63: #{plm_forward.1} parent=58 // loop_body
                  %v262 = vld [vmem:[%s260] sm:$0xff]
                  %263 = vst [vmem:[%s261] sm:$0xff] %v262
                  %v264 = vld [vmem:[%s260 + $0x18] sm:$0xff]
                  %265 = vst [vmem:[%s261 + $0x8] sm:$0xff] %v264
                $region64: #{plm_forward.1} parent=58 // loop_footer
                  %s259 = sadd.s32 1, %s255
                $region65: #{plm_forward.1} parent=58 // loop_footer_branch
                  %254 = sbr.rel target = $region61
                $region66: #{plm_forward.1} parent=58 // loop_exit
                  _
              $region59: #{plm_forward.1} parent=43 // pred_fallthru
                _
              // Predicated region
              $region67: #{plm_forward.1} parent=43 // pred_check
                _
              $region68: #{plm_forward.1} parent=43 // pred_check_branch
                %267 = sbr.rel target = $region70
              $region69: #{plm_forward.1} parent=43 // pred_region
                _
              $region70: #{plm_forward.1} parent=43 // pred_fallthru
                _
            $region44: #{plm_forward.1} parent=39 // pred_fallthru
              _
            // Predicated region
            $region45: #{plm_forward.1} parent=39 // pred_check
              _
            $region46: #{plm_forward.1} parent=39 // pred_check_branch
              %238 = sbr.rel target = $region48
            $region47: #{plm_forward.1} parent=39 // pred_region
              loop: start=0, step=1, limit=1
              $region49: #{plm_forward.1} parent=47 // loop_pre_header
                _
              $region50: #{plm_forward.1} parent=47 // loop_header
                %s241 = sphi 0, %s245
                %p242 = scmp.ge.s32.totalorder %s241, 1
                %s246 = sphi %s232, %s232
                %s247 = sphi %s227, %s227
              $region51: #{plm_forward.1} parent=47 // loop_header_branch
                %244 = sbr.rel (%p242) target = $region55
              $region52: #{plm_forward.1} parent=47 // loop_body
                %v248 = vld [vmem:[%s246] sm:$0xff]
                %249 = vst [vmem:[%s247] sm:$0xff] %v248
                %v250 = vld [vmem:[%s246 + $0x18] sm:$0xff]
                %251 = vst [vmem:[%s247 + $0x8] sm:$0xff] %v250
              $region53: #{plm_forward.1} parent=47 // loop_footer
                %s245 = sadd.s32 1, %s241
              $region54: #{plm_forward.1} parent=47 // loop_footer_branch
                %240 = sbr.rel target = $region50
              $region55: #{plm_forward.1} parent=47 // loop_exit
                _
            $region48: #{plm_forward.1} parent=39 // pred_fallthru
              _
          $region40: #{plm_forward.1} parent=35 // pred_fallthru
            _
          %268 = vnop
        $region36: #{plm_forward.1} parent=31 // pred_fallthru
          _
      $region32: #{plm_forward.1} parent=5 // pred_fallthru
        _
      %p269 = scmp.le.s32.totalorder 1, %s14
      %p270 = scmp.lt.s32.totalorder %s14, 4
      %p271 = pnand %p269, %p270
      %p272 = pneg %p271
      // Predicated region
      $region71: #{plm_forward.1} parent=5 // pred_check
        _
      $region72: #{plm_forward.1} parent=5 // pred_check_branch
        %274 = sbr.rel (%p271) target = $region74
      $region73: #{plm_forward.1} parent=5 // pred_region
        %s275 = ssub.s32 %s14, 1
        %s276 = sand.u32 %s41, 1
        %s277 = sand.u32 %s41, 1
        %s278 = smul.addr %s277, 16
        %s279 = scalar_lea.vmem [#allocation3], %s278
        // Predicated region
        $region75: #{plm_forward.1} parent=73 // pred_check
          %p280 = pneg %p54
        $region76: #{plm_forward.1} parent=73 // pred_check_branch
          %282 = sbr.rel (%p280) target = $region78
        $region77: #{plm_forward.1} parent=73 // pred_region
          _
        $region78: #{plm_forward.1} parent=73 // pred_fallthru
          _
        %s283 = sand.u32 %s41, 1
        %s284 = sand.u32 %s41, 1
        %s285 = smul.addr %s284, 16
        %s286 = scalar_lea.vmem [#allocation3], %s285
        %p287 = pneg %p54
        %p288 = pneg %p51
        %p289 = pneg %p75
        %p290 = pneg %p72
        %p291 = pneg %p96
        %p292 = pneg %p93
        %p293 = pneg %p117
        %p294 = pneg %p114
        %p295 = pneg %p138
        %p296 = pneg %p135
        %p297 = pneg %p164
        %p298 = pneg %p161
        %p299 = pneg %p190
        %p300 = pneg %p187
        %p301 = scmp.lt.s32.totalorder %s23, 0
        %s302 = scalar_select %p301, %s23, 0
        %s303 = smul.addr %s302, 2
        %s304 = scalar_lea.vmem %s6, %s303
        %s305 = smul.u32 2, %s23
        %p306 = scmp.lt.s32.totalorder %s23, 0
        %s307 = scalar_select %p306, %s23, 0
        %s308 = smul.addr %s307, 2
        %s309 = scalar_lea.vmem %s6, %s308
        %p310 = scmp.eq.s32.totalorder %s24, 0
        // Predicated region
        $region79: #{plm_forward.1} parent=73 // pred_check
          %p311 = pneg %p310
        $region80: #{plm_forward.1} parent=73 // pred_check_branch
          %313 = sbr.rel (%p311) target = $region82
        $region81: #{plm_forward.1} parent=73 // pred_region
          %vm314 = vcmask 254976
          %315 = vst.msk [vmem:[#allocation2] sm:$0x3] %vm314, 0.0
        $region82: #{plm_forward.1} parent=73 // pred_fallthru
          _
        %v316 = vld [vmem:[%s279] sm:$0xff]
        %v317 = vld [vmem:[%s279 + $0x8] sm:$0xff]
        %v318 = vld [vmem:[%s1] sm:$0xff]
        %v319 = vld [vmem:[%s1 + $0x8] sm:$0xff]
        %v320 = vld [vmem:[%s1 + $0x10] sm:$0xff]
        %v321 = vld [vmem:[%s1 + $0x18] sm:$0xff]
        %v322 = vld [vmem:[%s2] sm:$0x1]
        %v324 = vlaneseq
        %v325 = vshrl.u32 %v324, 7
        %v326 = vsub.s32 0, %v325
        %v327 = vrot.slane %v322, %v326
        %vm329 = vcmask 261120
        %v331 = vsel %vm329, %v316, 0
        %v334 = vsel %vm329, %v317, 0
        %336 = vmatprep.subr.mxu0 0.0
        %337 = vmatpush1.msra.mxu0 %v318
        %338 = vmatprep.subr.mxu0 0.0
        %339 = vmatpush1.msra.mxu0 %v319
        %340 = vmatprep.subr.mxu0 0.0
        %341 = vmatpush1.msra.mxu0 %v320
        %342 = vmatprep.subr.mxu0 0.0
        %343 = vmatpush1.msra.mxu0 %v321
        %344 = vmatprep.subr.mxu0 0.0
        %345 = vmatpush1.msra.mxu0 0.0
        %346 = vmatprep.subr.mxu0 0.0
        %347 = vmatpush1.msra.mxu0 0.0
        %348 = vmatprep.subr.mxu0 0.0
        %349 = vmatpush1.msra.mxu0 0.0
        %350 = vmatprep.subr.mxu0 0.0
        %351 = vmatpush1.msra.mxu0 0.0
        %352 = vmatprep.subr.mxu0 0.0
        %353 = vmatpush1.msra.mxu0 0.0
        %354 = vmatprep.subr.mxu0 0.0
        %355 = vmatpush1.msra.mxu0 0.0
        %356 = vmatprep.subr.mxu0 0.0
        %357 = vmatpush1.msra.mxu0 0.0
        %358 = vmatprep.subr.mxu0 0.0
        %359 = vmatpush1.msra.mxu0 0.0
        %360 = vmatprep.subr.mxu0 0.0
        %361 = vmatpush1.msra.mxu0 0.0
        %362 = vmatprep.subr.mxu0 0.0
        %363 = vmatpush1.msra.mxu0 0.0
        %364 = vmatprep.subr.mxu0 0.0
        %365 = vmatpush1.msra.mxu0 0.0
        %366 = vmatprep.subr.mxu0 0.0
        %367 = vmatpush1.msra.mxu0 0.0
        %368 = vmatprep.subr.mxu0 0.0
        %369 = vmatpush1.msra.mxu0 0.0
        %370 = vmatprep.subr.mxu0 0.0
        %371 = vmatpush1.msra.mxu0 0.0
        %372 = vmatprep.subr.mxu0 0.0
        %373 = vmatpush1.msra.mxu0 0.0
        %374 = vmatprep.subr.mxu0 0.0
        %375 = vmatpush1.msra.mxu0 0.0
        %376 = vmatprep.subr.mxu0 0.0
        %377 = vmatpush1.msra.mxu0 0.0
        %378 = vmatprep.subr.mxu0 0.0
        %379 = vmatpush1.msra.mxu0 0.0
        %380 = vmatprep.subr.mxu0 0.0
        %381 = vmatpush1.msra.mxu0 0.0
        %382 = vmatprep.subr.mxu0 0.0
        %383 = vmatpush1.msra.mxu0 0.0
        %384 = vmatprep.subr.mxu0 0.0
        %385 = vmatpush1.msra.mxu0 0.0
        %386 = vmatprep.subr.mxu0 0.0
        %387 = vmatpush1.msra.mxu0 0.0
        %388 = vmatprep.subr.mxu0 0.0
        %389 = vmatpush1.msra.mxu0 0.0
        %390 = vmatprep.subr.mxu0 0.0
        %391 = vmatpush1.msra.mxu0 0.0
        %392 = vmatprep.subr.mxu0 0.0
        %393 = vmatpush1.msra.mxu0 0.0
        %394 = vmatprep.subr.mxu0 0.0
        %395 = vmatpush1.msra.mxu0 0.0
        %396 = vmatprep.subr.mxu0 0.0
        %397 = vmatpush1.msra.mxu0 0.0
        %398 = vmatprep.subr.mxu0 0.0
        %399 = vmatpush1.msra.mxu0 0.0
        %400 = vmatprep.mubr.f32.mxu0 0.0
        %401 = vmatmul.mubr.f32.gmra.mrb[0].mxu0 %v331
        %v402 = vpop.f32.mrb[0].mxu0
        %v403 = vadd.f32 %v327, %v402
        %v404 = vpop.f32.mrb[0].mxu0
        %405 = vmatprep.mubr.f32.mxu0 0.0
        %406 = vmatmul.mubr.f32.gmra.mrb[0].mxu0 %v334
        %v407 = vpop.f32.mrb[0].mxu0
        %v408 = vadd.f32 %v327, %v407
        %v409 = vpop.f32.mrb[0].mxu0
        %410 = vdwg.mxu0
        %v411 = vmul.f32 %v403, %v403
        %v412 = vmul.f32 %v408, %v408
        %v413 = vmul.f32 %v403, %v411
        %v414 = vmul.f32 %v408, %v412
        %v415 = vmul.f32 %v413, 0.044715
        %v416 = vmul.f32 %v414, 0.044715
        %v417 = vadd.f32 %v403, %v415
        %v418 = vadd.f32 %v408, %v416
        %v419 = vmul.f32 %v417, 0.7978846
        %v420 = vmul.f32 %v418, 0.7978846
        %v421 = vtanh.pop %v419
        %v422 = vtanh.pop %v420
        %v423 = vadd.f32 %v421, 1.0
        %v424 = vadd.f32 %v422, 1.0
        %v425 = vmul.f32 %v423, 0.5
        %v426 = vmul.f32 %v424, 0.5
        %v427 = vmul.f32 %v403, %v425
        %v428 = vmul.f32 %v408, %v426
        %v429 = vlaneseq
        %v430 = vshrl.u32 %v429, 7
        %s431 = smul.u32 %s24, 8
        %v432 = vstv %s431
        %v433 = vadd.s32 %v432, %v430
        %vm434 = vcmp.lt.s32.totalorder %v433, 20
        %v435 = vsel %vm434, 1, 0
        %vm436 = vcmp.eq.s32.totalorder %v435, 1
        %v437 = vsel %vm436, %v427, 0.0
        %v438 = vsel %vm436, %v428, 0.0
        %v439 = vld [vmem:[#allocation2] sm:$0x3]
        %v440 = vsel %vm329, %v437, 0.0
        %v441 = vrot.slane %v440, 4
        %v442 = vadd.f32 %v440, %v441
        %v443 = vrot.slane %v442, 2
        %v444 = vadd.f32 %v442, %v443
        %v445 = vrot.slane %v444, 1
        %v446 = vadd.f32 %v444, %v445
        %v447 = vsel %vm329, %v438, 0.0
        %v448 = vrot.slane %v447, 4
        %v449 = vadd.f32 %v447, %v448
        %v450 = vrot.slane %v449, 2
        %v451 = vadd.f32 %v449, %v450
        %v452 = vrot.slane %v451, 1
        %v453 = vadd.f32 %v451, %v452
        %vm456 = vcmask 1041409
        %v457 = vsel %vm456, %v453, %v446
        %v459 = vadd.f32 %v439, %v457
        %vm460 = vcmask 254976
        %461 = vst.msk [vmem:[#allocation2] sm:$0x3] %vm460, %v459
        %p462 = scmp.eq.s32.totalorder %s24, 2
        // Predicated region
        $region83: #{plm_forward.1} parent=73 // pred_check
          %p463 = pneg %p462
        $region84: #{plm_forward.1} parent=73 // pred_check_branch
          %465 = sbr.rel (%p463) target = $region86
        $region85: #{plm_forward.1} parent=73 // pred_region
          %v466 = vld [vmem:[#allocation2] sm:$0x3]
          %v467 = vmul.f32 %v466, 0.05
          %468 = vst.msk [vmem:[#allocation4] sm:$0x3] %vm460, %v467
          %v469 = vld [vmem:[%s3] sm:$0xff]
          %v470 = vld [vmem:[%s3 + $0x8] sm:$0xff]
          %v471 = vld [vmem:[%s3 + $0x10] sm:$0xff]
          %v472 = vld [vmem:[%s3 + $0x18] sm:$0xff]
          %v473 = vld [vmem:[%s4] sm:$0x1]
          %v475 = vlaneseq
          %v476 = vshrl.u32 %v475, 7
          %v477 = vsub.s32 0, %v476
          %v478 = vrot.slane %v473, %v477
          %v481 = vsel %vm329, %v467, 0
          %483 = vmatprep.subr.mxu0 0.0
          %484 = vmatpush1.msra.mxu0 %v469
          %485 = vmatprep.subr.mxu0 0.0
          %486 = vmatpush1.msra.mxu0 %v470
          %487 = vmatprep.subr.mxu0 0.0
          %488 = vmatpush1.msra.mxu0 %v471
          %489 = vmatprep.subr.mxu0 0.0
          %490 = vmatpush1.msra.mxu0 %v472
          %491 = vmatprep.subr.mxu0 0.0
          %492 = vmatpush1.msra.mxu0 0.0
          %493 = vmatprep.subr.mxu0 0.0
          %494 = vmatpush1.msra.mxu0 0.0
          %495 = vmatprep.subr.mxu0 0.0
          %496 = vmatpush1.msra.mxu0 0.0
          %497 = vmatprep.subr.mxu0 0.0
          %498 = vmatpush1.msra.mxu0 0.0
          %499 = vmatprep.subr.mxu0 0.0
          %500 = vmatpush1.msra.mxu0 0.0
          %501 = vmatprep.subr.mxu0 0.0
          %502 = vmatpush1.msra.mxu0 0.0
          %503 = vmatprep.subr.mxu0 0.0
          %504 = vmatpush1.msra.mxu0 0.0
          %505 = vmatprep.subr.mxu0 0.0
          %506 = vmatpush1.msra.mxu0 0.0
          %507 = vmatprep.subr.mxu0 0.0
          %508 = vmatpush1.msra.mxu0 0.0
          %509 = vmatprep.subr.mxu0 0.0
          %510 = vmatpush1.msra.mxu0 0.0
          %511 = vmatprep.subr.mxu0 0.0
          %512 = vmatpush1.msra.mxu0 0.0
          %513 = vmatprep.subr.mxu0 0.0
          %514 = vmatpush1.msra.mxu0 0.0
          %515 = vmatprep.subr.mxu0 0.0
          %516 = vmatpush1.msra.mxu0 0.0
          %517 = vmatprep.subr.mxu0 0.0
          %518 = vmatpush1.msra.mxu0 0.0
          %519 = vmatprep.subr.mxu0 0.0
          %520 = vmatpush1.msra.mxu0 0.0
          %521 = vmatprep.subr.mxu0 0.0
          %522 = vmatpush1.msra.mxu0 0.0
          %523 = vmatprep.subr.mxu0 0.0
          %524 = vmatpush1.msra.mxu0 0.0
          %525 = vmatprep.subr.mxu0 0.0
          %526 = vmatpush1.msra.mxu0 0.0
          %527 = vmatprep.subr.mxu0 0.0
          %528 = vmatpush1.msra.mxu0 0.0
          %529 = vmatprep.subr.mxu0 0.0
          %530 = vmatpush1.msra.mxu0 0.0
          %531 = vmatprep.subr.mxu0 0.0
          %532 = vmatpush1.msra.mxu0 0.0
          %533 = vmatprep.subr.mxu0 0.0
          %534 = vmatpush1.msra.mxu0 0.0
          %535 = vmatprep.subr.mxu0 0.0
          %536 = vmatpush1.msra.mxu0 0.0
          %537 = vmatprep.subr.mxu0 0.0
          %538 = vmatpush1.msra.mxu0 0.0
          %539 = vmatprep.subr.mxu0 0.0
          %540 = vmatpush1.msra.mxu0 0.0
          %541 = vmatprep.subr.mxu0 0.0
          %542 = vmatpush1.msra.mxu0 0.0
          %543 = vmatprep.subr.mxu0 0.0
          %544 = vmatpush1.msra.mxu0 0.0
          %545 = vmatprep.subr.mxu0 0.0
          %546 = vmatpush1.msra.mxu0 0.0
          %547 = vmatprep.mubr.f32.mxu0 0.0
          %548 = vmatmul.mubr.f32.gmra.mrb[0].mxu0 %v481
          %v549 = vpop.f32.mrb[0].mxu0
          %v550 = vadd.f32 %v478, %v549
          %v551 = vpop.f32.mrb[0].mxu0
          %552 = vdwg.mxu0
          %553 = vst [vmem:[%s309] sm:$0x3] %v550
        $region86: #{plm_forward.1} parent=73 // pred_fallthru
          _
        %p554 = scmp.lt.s32.totalorder %s23, 0
        %s555 = scalar_select %p554, %s23, 0
        %s556 = smul.addr %s555, 2
        %s557 = scalar_lea.vmem %s6, %s556
        // Predicated region
        $region87: #{plm_forward.1} parent=73 // pred_check
          %p558 = pneg %p161
        $region88: #{plm_forward.1} parent=73 // pred_check_branch
          %560 = sbr.rel (%p558) target = $region90
        $region89: #{plm_forward.1} parent=73 // pred_region
          %s562 = ssub.s32 32, 32
          %563 = vsyncadd [#allocation5], %s562
          %s564 = smul.addr %s23, 32
          %s565 = scalar_lea.hbm %s5, %s564
          %s567 = sshll.u32 [#allocation4], 4
          %s568 = int_to_ptr.vmem [resolvable:$true] %s567
          %570 = dma.vmem_to_hbm [thread:$0]  %s568, 32, %s565, [#allocation5]
        $region90: #{plm_forward.1} parent=73 // pred_fallthru
          _
        // Predicated region
        $region91: #{plm_forward.1} parent=73 // pred_check
          %p571 = pneg %p187
        $region92: #{plm_forward.1} parent=73 // pred_check_branch
          %573 = sbr.rel (%p571) target = $region94
        $region93: #{plm_forward.1} parent=73 // pred_region
          _
        $region94: #{plm_forward.1} parent=73 // pred_fallthru
          _
        // Predicated region
        $region95: #{plm_forward.1} parent=73 // pred_check
          %p574 = pneg %p161
        $region96: #{plm_forward.1} parent=73 // pred_check_branch
          %576 = sbr.rel (%p574) target = $region98
        $region97: #{plm_forward.1} parent=73 // pred_region
          %577 = dma.done [#allocation5], 32
        $region98: #{plm_forward.1} parent=73 // pred_fallthru
          _
        // Predicated region
        $region99: #{plm_forward.1} parent=73 // pred_check
          %p578 = pneg %p187
        $region100: #{plm_forward.1} parent=73 // pred_check_branch
          %580 = sbr.rel (%p578) target = $region102
        $region101: #{plm_forward.1} parent=73 // pred_region
          %p581 = scmp.lt.s32.totalorder %s23, 0
          %s582 = scalar_select %p581, %s23, 0
          %s583 = smul.addr %s582, 2
          %s584 = scalar_lea.vmem %s6, %s583
        $region102: #{plm_forward.1} parent=73 // pred_fallthru
          _
      $region74: #{plm_forward.1} parent=5 // pred_fallthru
        _
      %p585 = scmp.le.s32.totalorder 2, %s14
      // Predicated region
      $region103: #{plm_forward.1} parent=5 // pred_check
        %p586 = pneg %p585
      $region104: #{plm_forward.1} parent=5 // pred_check_branch
        %588 = sbr.rel (%p586) target = $region106
      $region105: #{plm_forward.1} parent=5 // pred_region
        %s589 = ssub.s32 %s14, 2
      $region106: #{plm_forward.1} parent=5 // pred_fallthru
        _
    $region6: #{plm_forward.1} parent=1 // loop_footer
      %s18 = sadd.s32 1, %s14
    $region7: #{plm_forward.1} parent=1 // loop_footer_branch
      %13 = sbr.rel target = $region3
    $region8: #{plm_forward.1} parent=1 // loop_exit
      _
    %590 = vsyncpa [#allocation5], 1
    %s591 = scalar_lea.sflag [#allocation5], 1
    %592 = vsyncpa %s591, 1

</llo_original>
